<compile_context>
chip_gen: v7x
topology: tpu7x:2x2x1
jax: 0.10.0
libtpu: 0.0.40
codegen_flags: <defaults>
</compile_context>

<pallas_src>
import jax
import jax.numpy as jnp
from jax import lax
from jax.experimental import pallas as pl
from jax.experimental.pallas import tpu as pltpu

EPS = 1e-5  # torch.nn.LayerNorm default


# --------------------------------------------------------------------------- #
# small helpers
# --------------------------------------------------------------------------- #
def _layernorm(x, gamma, beta):
    # biased variance, f32 statistics -- matches PyTorch LayerNorm.
    mu = jnp.mean(x, axis=-1, keepdims=True)
    var = jnp.mean((x - mu) ** 2, axis=-1, keepdims=True)
    return (x - mu) * lax.rsqrt(var + EPS) * gamma + beta


def _gelu(x):
    # torch.nn.GELU() default = exact erf formulation.
    return jax.nn.gelu(x, approximate=False)


def _extract_patches(img, patch_size):
    # img: (B, 1, H, W) -> (B, ns, ph*pw); token order matches
    # Conv2d(stride=patch) -> flatten(2) -> transpose(1, 2).
    B, C, H, W = img.shape
    ph, pw = patch_size
    x = img.reshape(B, C, H // ph, ph, W // pw, pw)
    x = x.transpose(0, 2, 4, 1, 3, 5)
    return x.reshape(B, (H // ph) * (W // pw), C * ph * pw)


# --------------------------------------------------------------------------- #
# 1) patch-embedding kernel
# --------------------------------------------------------------------------- #
def embed_kernel(p_ref, we_ref, be_ref, o_ref):
    # p_ref: (B*ns, pd) f32; we_ref: (pd, nc) f32 (pre-transposed); be_ref: (1, nc)
    o_ref[...] = (jnp.dot(p_ref[...], we_ref[...],
                          preferred_element_type=jnp.float32)
                  + be_ref[...]).astype(o_ref.dtype)


def patch_embed(img, params):
    ph, pw = params["patch_size"]
    B = img.shape[0]
    patches = _extract_patches(img, (ph, pw))          # (B, ns, pd)
    _, ns, pd = patches.shape
    nc = params["embed_w"].shape[1]
    flat = patches.reshape(B * ns, pd)
    out = pl.pallas_call(
        embed_kernel,
        out_shape=jax.ShapeDtypeStruct((B * ns, nc), jnp.float32),
        grid_spec=pltpu.PrefetchScalarGridSpec(
            num_scalar_prefetch=0,
            grid=(1,),
            in_specs=[pl.BlockSpec((B * ns, pd), lambda i: (0, 0)),
                      pl.BlockSpec((pd, nc), lambda i: (0, 0)),
                      pl.BlockSpec((1, nc), lambda i: (0, 0))],
            out_specs=pl.BlockSpec((B * ns, nc), lambda i: (0, 0)),
        ),
    )(flat, params["embed_w"], params["embed_b"])
    return out.reshape(B, ns, nc)


# --------------------------------------------------------------------------- #
# 2) fused MixerLayer kernel
# --------------------------------------------------------------------------- #
def mixer_layer_kernel(x_ref,
                       g1_ref, bt1_ref, g2_ref, bt2_ref,
                       w1_ref, b1_ref, w2_ref, b2_ref,
                       w3t_ref, b3_ref, w4t_ref, b4_ref,
                       o_ref):
    bt, ns, nc = x_ref.shape
    x = x_ref[...].astype(jnp.float32)                     # (bt, ns, nc)

    # ---- LayerNorm 1 (over channels) ----
    y = _layernorm(x, g1_ref[...], bt1_ref[...])           # (bt, ns, nc) f32

    # ---- Token-mixing MLP (mixes along ns); transpose-free formulation:
    #      h[d,c] = sum_s W1[d,s] * y[s,c]   -> plain [ds,ns] @ [ns,nc]
    #      z[s,c] = sum_d W2[s,d] * h[d,c]   -> plain [ns,ds] @ [ds,nc]
    y_bf = y.astype(jnp.bfloat16)
    w1 = w1_ref[...]                                       # (ds, ns) bf16
    w2 = w2_ref[...]                                       # (ns, ds) bf16
    b1 = b1_ref[...]                                       # (ds, 1)  f32
    b2 = b2_ref[...]                                       # (ns, 1)  f32
    z_rows = []
    for b in range(bt):                                    # static unroll, bt is tiny
        h = jnp.dot(w1, y_bf[b], preferred_element_type=jnp.float32)   # (ds, nc)
        h = _gelu(h + b1).astype(jnp.bfloat16)
        z = jnp.dot(w2, h, preferred_element_type=jnp.float32) + b2    # (ns, nc)
        z_rows.append(z)
    z3 = jnp.stack(z_rows, axis=0)                         # (bt, ns, nc)

    u = y + z3                                             # residual onto *normalized* x
                                                           # (matches the PyTorch module)

    # ---- LayerNorm 2 + channel-mixing MLP (mixes along nc) ----
    v = _layernorm(u, g2_ref[...], bt2_ref[...])           # (bt, ns, nc)
    v2 = v.astype(jnp.bfloat16).reshape(bt * ns, nc)       # lane dim unchanged
    # NOTE: at production sizes (ns*dc large) these two matmuls should be chunked
    # over rows to keep intermediates register-resident.
    h2 = _gelu(jnp.dot(v2, w3t_ref[...],
                       preferred_element_type=jnp.float32) + b3_ref[...])   # (bt*ns, dc)
    w = jnp.dot(h2.astype(jnp.bfloat16), w4t_ref[...],
                preferred_element_type=jnp.float32) + b4_ref[...]           # (bt*ns, nc)

    o_ref[...] = (u + w.reshape(bt, ns, nc)).astype(o_ref.dtype)


_PARAM_ORDER = ("g1", "bt1", "g2", "bt2",
                "w1", "b1", "w2", "b2",
                "w3t", "b3", "w4t", "b4")

_SINGLE_BUFFER_WEIGHTS = True   # flipped off if this jax build rejects pl.Buffered(1)


def _mixer_layer_call(x, p, batch_tile, single_buffer):
    B, ns, nc = x.shape
    args = [p[k] for k in _PARAM_ORDER]

    def const_spec(shape):
        if single_buffer:
            # Constant index map -> double buffering buys nothing; keep one copy resident.
            return pl.BlockSpec(shape, lambda i: (0,) * len(shape),
                                pipeline_mode=pl.Buffered(1))
        return pl.BlockSpec(shape, lambda i: (0,) * len(shape))

    block_bytes = batch_tile * ns * nc * 4
    param_bytes = sum(int(a.size) * a.dtype.itemsize for a in args)
    vmem_limit = int(min(max(2 * (param_bytes + 4 * block_bytes) + (4 << 20),
                             32 * 1024 * 1024),
                         120 * 1024 * 1024))

    return pl.pallas_call(
        mixer_layer_kernel,
        out_shape=jax.ShapeDtypeStruct((B, ns, nc), x.dtype),
        grid_spec=pltpu.PrefetchScalarGridSpec(
            num_scalar_prefetch=0,
            grid=(B // batch_tile,),
            in_specs=[pl.BlockSpec((batch_tile, ns, nc), lambda i: (i, 0, 0))]
                     + [const_spec(a.shape) for a in args],
            out_specs=pl.BlockSpec((batch_tile, ns, nc), lambda i: (i, 0, 0)),
        ),
        compiler_params=pltpu.CompilerParams(
            dimension_semantics=("parallel",),
            vmem_limit_bytes=vmem_limit),
    )(x, *args)


def mixer_layer(x, layer_params, *, batch_tile=1):
    global _SINGLE_BUFFER_WEIGHTS
    assert x.shape[0] % batch_tile == 0
    if _SINGLE_BUFFER_WEIGHTS:
        try:
            return _mixer_layer_call(x, layer_params, batch_tile, True)
        except Exception:
            _SINGLE_BUFFER_WEIGHTS = False   # fall back to default buffering
    return _mixer_layer_call(x, layer_params, batch_tile, False)


# --------------------------------------------------------------------------- #
# 3) fused classification head kernel
# --------------------------------------------------------------------------- #
def head_kernel(x_ref, g_ref, b_ref, wc_ref, bc_ref, o_ref):
    x = x_ref[...].astype(jnp.float32)                     # (B, ns, nc)
    y = _layernorm(x, g_ref[...], b_ref[...])
    pooled = jnp.mean(y, axis=1)                           # (B, nc)
    o_ref[...] = (jnp.dot(pooled, wc_ref[...],
                          preferred_element_type=jnp.float32)
                  + bc_ref[...]).astype(o_ref.dtype)


def classifier_head(x, params):
    B, ns, nc = x.shape
    ncls = params["head_w"].shape[1]
    return pl.pallas_call(
        head_kernel,
        out_shape=jax.ShapeDtypeStruct((B, ncls), jnp.float32),
        grid_spec=pltpu.PrefetchScalarGridSpec(
            num_scalar_prefetch=0,
            grid=(1,),
            in_specs=[pl.BlockSpec((B, ns, nc), lambda i: (0, 0, 0)),
                      pl.BlockSpec((1, nc), lambda i: (0, 0)),
                      pl.BlockSpec((1, nc), lambda i: (0, 0)),
                      pl.BlockSpec((nc, ncls), lambda i: (0, 0)),
                      pl.BlockSpec((1, ncls), lambda i: (0, 0))],
            out_specs=pl.BlockSpec((B, ncls), lambda i: (0, 0)),
        ),
    )(x, params["head_g"], params["head_b"], params["head_w"], params["head_bc"])


# --------------------------------------------------------------------------- #
# full Mixer forward
# --------------------------------------------------------------------------- #
def mixer_forward(img, params, *, batch_tile=1):
    x = patch_embed(img, params)                           # (B, ns, nc)
    for _ in range(params["num_layers"]):                  # shared weights, as in PyTorch
        x = mixer_layer(x, params["mixer"], batch_tile=batch_tile)
    return classifier_head(x, params)


# --------------------------------------------------------------------------- #
# parameters (kernel-ready layouts, produced once at init)
# --------------------------------------------------------------------------- #
def init_mixer_params(key, *, image_size, patch_size, nc, ds, dc,
                      num_layers, num_classes):
    ph, pw = patch_size
    pd = ph * pw
    ks = jax.random.split(key, 16)
    s = 0.02

    def nrm(k, shape, dtype=jnp.float32):
        return (s * jax.random.normal(k, shape, jnp.float32)).astype(dtype)

    mixer = {
        # LayerNorm affine params (slightly randomized so the test exercises them)
        "g1": 1.0 + nrm(ks[0], (1, nc)), "bt1": nrm(ks[1], (1, nc)),
        "g2": 1.0 + nrm(ks[2], (1, nc)), "bt2": nrm(ks[3], (1, nc)),
        # token-mix Linear(ns->ds), Linear(ds->ns): native (out,in) layout, bf16,
        # used as matmul LHS -> no transposes in the kernel; column biases.
        "w1": nrm(ks[4], (ds, ns := (image_size[0] // ph) * (image_size[1] // pw)),
                  jnp.bfloat16),
        "b1": nrm(ks[5], (ds, 1)),
        "w2": nrm(ks[6], (ns, ds), jnp.bfloat16), "b2": nrm(ks[7], (ns, 1)),
        # channel-mix Linear(nc->dc), Linear(dc->nc): pre-transposed once here.
        "w3t": nrm(ks[8], (nc, dc), jnp.bfloat16), "b3": nrm(ks[9], (1, dc)),
        "w4t": nrm(ks[10], (dc, nc), jnp.bfloat16), "b4": nrm(ks[11], (1, nc)),
    }
    return {
        "patch_size": (ph, pw),
        "num_layers": num_layers,
        # Conv2d(1, nc, kernel=stride=patch) == Linear(pd -> nc), weight pre-transposed.
        "embed_w": nrm(ks[12], (pd, nc)), "embed_b": nrm(ks[13], (1, nc)),
        "mixer": mixer,
        "head_g": jnp.ones((1, nc), jnp.float32),
        "head_b": jnp.zeros((1, nc), jnp.float32),
        "head_w": nrm(ks[14], (nc, num_classes)), "head_bc": nrm(ks[15], (1, num_classes)),
    }


# --------------------------------------------------------------------------- #
# pure-JAX reference (mirrors the PyTorch forward exactly)
# --------------------------------------------------------------------------- #
def _mixer_layer_ref(x, p):
    hi = lax.Precision.HIGHEST
    w1 = p["w1"].astype(jnp.float32)
    w2 = p["w2"].astype(jnp.float32)
    w3t = p["w3t"].astype(jnp.float32)
    w4t = p["w4t"].astype(jnp.float32)
    y = _layernorm(x, p["g1"], p["bt1"])
    h = jax.nn.gelu(jnp.einsum("ds,bsc->bdc", w1, y, precision=hi) + p["b1"],
                    approximate=False)
    z = jnp.einsum("sd,bdc->bsc", w2, h, precision=hi) + p["b2"]
    u = y + z
    v = _layernorm(u, p["g2"], p["bt2"])
    h2 = jax.nn.gelu(jnp.einsum("bsc,ce->bse", v, w3t, precision=hi) + p["b3"],
                     approximate=False)
    w = jnp.einsum("bse,ec->bsc", h2, w4t, precision=hi) + p["b4"]
    return u + w


def mixer_forward_ref(img, params):
    hi = lax.Precision.HIGHEST
    patches = _extract_patches(img, params["patch_size"])
    x = jnp.einsum("bsp,pc->bsc", patches, params["embed_w"], precision=hi) \
        + params["embed_b"]
    for _ in range(params["num_layers"]):
        x = _mixer_layer_ref(x, params["mixer"])
    y = _layernorm(x, params["head_g"], params["head_b"])
    pooled = jnp.mean(y, axis=1)
    return jnp.dot(pooled, params["head_w"], precision=hi) + params["head_bc"]


# --------------------------------------------------------------------------- #
if __name__ == "__main__":
    B = 4
    image_size = (16, 16)
    patch_size = (4, 4)          # -> ns = 16 tokens, patch dim = 16
    nc = 128                     # embed dim (multiple of 128 -> lane-dense stores)
    ds, dc = 32, 256             # token-/channel-mix hidden dims (scaled-down)
    num_layers = 2
    num_classes = 10

    key = jax.random.PRNGKey(0)
    k_img, k_par = jax.random.split(key)
    img = jax.random.normal(k_img, (B, 1) + image_size, jnp.float32)
    params = init_mixer_params(k_par, image_size=image_size, patch_size=patch_size,
                               nc=nc, ds=ds, dc=dc, num_layers=num_layers,
                               num_classes=num_classes)

    out = mixer_forward(img, params, batch_tile=2)   # grid=(2,) -> both v7x TCs busy
    out = jax.block_until_ready(out)

    ref = mixer_forward_ref(img, params)
    assert out.shape == (B, num_classes)
    max_err = float(jnp.max(jnp.abs(out - ref)))
    # bf16 MXU operands (f32 accumulation) -> loosened tolerance vs. the pure-f32 ref.
    assert max_err < 3e-2, f"max abs err {max_err}"
    print("KERNEL_OK")
</pallas_src>

<mosaic_0001>
module attributes {stable_mosaic.version = 11 : i64} {
  func.func @embed_kernel(%arg0: i32, %arg1: memref<64x16xf32, #tpu.memory_space<vmem>>, %arg2: memref<16x128xf32, #tpu.memory_space<vmem>>, %arg3: memref<1x128xf32, #tpu.memory_space<vmem>>, %arg4: memref<64x128xf32, #tpu.memory_space<vmem>>) attributes {dimension_semantics = [#tpu.dimension_semantics<arbitrary>], iteration_bounds = array<i64: 1>, scalar_prefetch = 0 : i64, scratch_operands = 0 : i64, tpu.core_type = #tpu.core_type<tc>, window_params = [{pipeline_mode = #tpu.pipeline_mode<synchronous>, transform_indices = @transform_0, window_bounds = array<i64: 64, 16>}, {pipeline_mode = #tpu.pipeline_mode<synchronous>, transform_indices = @transform_1, window_bounds = array<i64: 16, 128>}, {pipeline_mode = #tpu.pipeline_mode<synchronous>, transform_indices = @transform_2, window_bounds = array<i64: 1, 128>}, {pipeline_mode = #tpu.pipeline_mode<synchronous>, transform_indices = @transform_3, window_bounds = array<i64: 64, 128>}]} {
    %c0 = arith.constant 0 : index
    %c0_0 = arith.constant 0 : index
    %0 = vector.load %arg1[%c0, %c0_0] : memref<64x16xf32, #tpu.memory_space<vmem>>, vector<64x16xf32>
    %c0_1 = arith.constant 0 : index
    %c0_2 = arith.constant 0 : index
    %1 = vector.load %arg2[%c0_1, %c0_2] : memref<16x128xf32, #tpu.memory_space<vmem>>, vector<16x128xf32>
    %cst = arith.constant dense<0.000000e+00> : vector<64x128xf32>
    %2 = tpu.matmul %0, %1, %cst {dimension_numbers = #tpu.dot_dimension_numbers<[1], [0], [0], [1], [0, 0, 1, 1], [], []>} : vector<64x16xf32>, vector<16x128xf32>, vector<64x128xf32> -> vector<64x128xf32>
    %c0_3 = arith.constant 0 : index
    %c0_4 = arith.constant 0 : index
    %3 = vector.load %arg3[%c0_3, %c0_4] : memref<1x128xf32, #tpu.memory_space<vmem>>, vector<1x128xf32>
    %4 = vector.broadcast %3 : vector<1x128xf32> to vector<64x128xf32>
    %5 = arith.addf %2, %4 : vector<64x128xf32>
    %c0_5 = arith.constant 0 : index
    %c0_6 = arith.constant 0 : index
    %6 = vector.load %arg4[%c0_5, %c0_6] : memref<64x128xf32, #tpu.memory_space<vmem>>, vector<64x128xf32>
    tpu.vector_store %arg4[%c0_5, %c0_6], %5 {strides = array<i32>} : memref<64x128xf32, #tpu.memory_space<vmem>>, vector<64x128xf32>,
    return
  }
  func.func @transform_0(%arg0: i32) -> (i32, i32) {
    %c0_i32 = arith.constant 0 : i32
    %c0_i32_0 = arith.constant 0 : i32
    %c0_i32_1 = arith.constant 0 : i32
    return %c0_i32, %c0_i32_0 : i32, i32
  }
  func.func @transform_1(%arg0: i32) -> (i32, i32) {
    %c0_i32 = arith.constant 0 : i32
    %c0_i32_0 = arith.constant 0 : i32
    %c0_i32_1 = arith.constant 0 : i32
    return %c0_i32, %c0_i32_0 : i32, i32
  }
  func.func @transform_2(%arg0: i32) -> (i32, i32) {
    %c0_i32 = arith.constant 0 : i32
    %c0_i32_0 = arith.constant 0 : i32
    %c0_i32_1 = arith.constant 0 : i32
    return %c0_i32, %c0_i32_0 : i32, i32
  }
  func.func @transform_3(%arg0: i32) -> (i32, i32) {
    %c0_i32 = arith.constant 0 : i32
    %c0_i32_0 = arith.constant 0 : i32
    %c0_i32_1 = arith.constant 0 : i32
    return %c0_i32, %c0_i32_0 : i32, i32
  }
}

</mosaic_0001>

<llo_original>
// kernel: tpu_custom_call.1
$region0: #{tpu_custom_call.1}
  #allocation0 [shape = 'u32[]', space=smem, size = 0x4, offset = 0x4, fixed_abs, tag = 'smem constant byte address 0x4 - core index']
  #allocation1 [shape = 'u32[144,128]{1,0:T(1,128)}', space=vmem, size = 0x12000, scoped, tag = 'internal scratch']
  %s0 = inlined_call_operand.vmem [shape: f32[64,16], index: 0, kind: input, shape index: {}]
  %s1 = inlined_call_operand.vmem [shape: f32[16,128], index: 1, kind: input, shape index: {}]
  %s2 = inlined_call_operand.vmem [shape: f32[1,128], index: 2, kind: input, shape index: {}]
  %s3 = inlined_call_operand.hbm [shape: f32[64,128], index: 3, kind: output, shape index: {}]
  %s4 = sld [smem:[#allocation0]]
  $region22: #{tpu_custom_call.1} parent=0
    _
  %s6 = ssub.s32 1, %s4
  %s7 = scalar_select 0, %s6, %s4
  $region1: #{tpu_custom_call.1} parent=0
    #allocation2 [shape = 'u8[32768]{0}', space=vmem, size = 0x8000, scoped, tag = 'output window, operand 0, single buffered']
    #allocation3 [shape = 's32[1]{0}', space=sflag, size = 0x4, scoped, tag = 'scoped memory for tpu_custom_call.1']
    %8 = vsyncpa [#allocation3], 0
    // Predicated region
    $region2: #{tpu_custom_call.1} parent=1 // pred_check
      _
    $region3: #{tpu_custom_call.1} parent=1 // pred_check_branch
      %10 = sbr.rel (0) target = $region5
    $region4: #{tpu_custom_call.1} parent=1 // pred_region
      _
    $region5: #{tpu_custom_call.1} parent=1 // pred_fallthru
      _
    // Predicated region
    $region6: #{tpu_custom_call.1} parent=1 // pred_check
      _
    $region7: #{tpu_custom_call.1} parent=1 // pred_check_branch
      %12 = sbr.rel (0) target = $region9
    $region8: #{tpu_custom_call.1} parent=1 // pred_region
      _
    $region9: #{tpu_custom_call.1} parent=1 // pred_fallthru
      _
    // Predicated region
    $region10: #{tpu_custom_call.1} parent=1 // pred_check
      _
    $region11: #{tpu_custom_call.1} parent=1 // pred_check_branch
      %14 = sbr.rel (0) target = $region13
    $region12: #{tpu_custom_call.1} parent=1 // pred_region
      _
    $region13: #{tpu_custom_call.1} parent=1 // pred_fallthru
      _
    %v15 = vld [vmem:[%s0] sm:$0xff]
    %v16 = vld [vmem:[%s0 + $0x8] sm:$0xff]
    %v17 = vld [vmem:[%s0 + $0x10] sm:$0xff]
    %v18 = vld [vmem:[%s0 + $0x18] sm:$0xff]
    %v19 = vld [vmem:[%s0 + $0x20] sm:$0xff]
    %v20 = vld [vmem:[%s0 + $0x28] sm:$0xff]
    %v21 = vld [vmem:[%s0 + $0x30] sm:$0xff]
    %v22 = vld [vmem:[%s0 + $0x38] sm:$0xff]
    %v23 = vld [vmem:[%s1] sm:$0xff]
    %v24 = vld [vmem:[%s1 + $0x8] sm:$0xff]
    %v25 = vld [vmem:[%s2] sm:$0x1]
    %v27 = vlaneseq
    %v28 = vshrl.u32 %v27, 7
    %v29 = vsub.s32 0, %v28
    %v30 = vrot.slane %v25, %v29
    %vm32 = vcmask 130048
    %v34 = vsel %vm32, %v15, 0
    %v37 = vsel %vm32, %v16, 0
    %v40 = vsel %vm32, %v17, 0
    %v43 = vsel %vm32, %v18, 0
    %v46 = vsel %vm32, %v19, 0
    %v49 = vsel %vm32, %v20, 0
    %v52 = vsel %vm32, %v21, 0
    %v55 = vsel %vm32, %v22, 0
    %57 = vmatprep.subr.mxu0 0.0
    %58 = vmatpush1.msra.mxu0 %v23
    %59 = vmatprep.subr.mxu0 0.0
    %60 = vmatpush1.msra.mxu0 %v24
    %61 = vmatprep.subr.mxu0 0.0
    %62 = vmatpush1.msra.mxu0 0.0
    %63 = vmatprep.subr.mxu0 0.0
    %64 = vmatpush1.msra.mxu0 0.0
    %65 = vmatprep.subr.mxu0 0.0
    %66 = vmatpush1.msra.mxu0 0.0
    %67 = vmatprep.subr.mxu0 0.0
    %68 = vmatpush1.msra.mxu0 0.0
    %69 = vmatprep.subr.mxu0 0.0
    %70 = vmatpush1.msra.mxu0 0.0
    %71 = vmatprep.subr.mxu0 0.0
    %72 = vmatpush1.msra.mxu0 0.0
    %73 = vmatprep.subr.mxu0 0.0
    %74 = vmatpush1.msra.mxu0 0.0
    %75 = vmatprep.subr.mxu0 0.0
    %76 = vmatpush1.msra.mxu0 0.0
    %77 = vmatprep.subr.mxu0 0.0
    %78 = vmatpush1.msra.mxu0 0.0
    %79 = vmatprep.subr.mxu0 0.0
    %80 = vmatpush1.msra.mxu0 0.0
    %81 = vmatprep.subr.mxu0 0.0
    %82 = vmatpush1.msra.mxu0 0.0
    %83 = vmatprep.subr.mxu0 0.0
    %84 = vmatpush1.msra.mxu0 0.0
    %85 = vmatprep.subr.mxu0 0.0
    %86 = vmatpush1.msra.mxu0 0.0
    %87 = vmatprep.subr.mxu0 0.0
    %88 = vmatpush1.msra.mxu0 0.0
    %89 = vmatprep.subr.mxu0 0.0
    %90 = vmatpush1.msra.mxu0 0.0
    %91 = vmatprep.subr.mxu0 0.0
    %92 = vmatpush1.msra.mxu0 0.0
    %93 = vmatprep.subr.mxu0 0.0
    %94 = vmatpush1.msra.mxu0 0.0
    %95 = vmatprep.subr.mxu0 0.0
    %96 = vmatpush1.msra.mxu0 0.0
    %97 = vmatprep.subr.mxu0 0.0
    %98 = vmatpush1.msra.mxu0 0.0
    %99 = vmatprep.subr.mxu0 0.0
    %100 = vmatpush1.msra.mxu0 0.0
    %101 = vmatprep.subr.mxu0 0.0
    %102 = vmatpush1.msra.mxu0 0.0
    %103 = vmatprep.subr.mxu0 0.0
    %104 = vmatpush1.msra.mxu0 0.0
    %105 = vmatprep.subr.mxu0 0.0
    %106 = vmatpush1.msra.mxu0 0.0
    %107 = vmatprep.subr.mxu0 0.0
    %108 = vmatpush1.msra.mxu0 0.0
    %109 = vmatprep.subr.mxu0 0.0
    %110 = vmatpush1.msra.mxu0 0.0
    %111 = vmatprep.subr.mxu0 0.0
    %112 = vmatpush1.msra.mxu0 0.0
    %113 = vmatprep.subr.mxu0 0.0
    %114 = vmatpush1.msra.mxu0 0.0
    %115 = vmatprep.subr.mxu0 0.0
    %116 = vmatpush1.msra.mxu0 0.0
    %117 = vmatprep.subr.mxu0 0.0
    %118 = vmatpush1.msra.mxu0 0.0
    %119 = vmatprep.subr.mxu0 0.0
    %120 = vmatpush1.msra.mxu0 0.0
    %121 = vmatprep.mubr.f32.mxu0 0.0
    %122 = vmatmul.mubr.f32.gmra.mrb[0].mxu0 %v34
    %v123 = vpop.f32.mrb[0].mxu0
    %v124 = vadd.f32 %v30, %v123
    %v125 = vpop.f32.mrb[0].mxu0
    %126 = vmatprep.mubr.f32.mxu0 0.0
    %127 = vmatmul.mubr.f32.gmra.mrb[0].mxu0 %v37
    %v128 = vpop.f32.mrb[0].mxu0
    %v129 = vadd.f32 %v30, %v128
    %v130 = vpop.f32.mrb[0].mxu0
    %131 = vmatprep.mubr.f32.mxu0 0.0
    %132 = vmatmul.mubr.f32.gmra.mrb[0].mxu0 %v40
    %v133 = vpop.f32.mrb[0].mxu0
    %v134 = vadd.f32 %v30, %v133
    %v135 = vpop.f32.mrb[0].mxu0
    %136 = vmatprep.mubr.f32.mxu0 0.0
    %137 = vmatmul.mubr.f32.gmra.mrb[0].mxu0 %v43
    %v138 = vpop.f32.mrb[0].mxu0
    %v139 = vadd.f32 %v30, %v138
    %v140 = vpop.f32.mrb[0].mxu0
    %141 = vmatprep.mubr.f32.mxu0 0.0
    %142 = vmatmul.mubr.f32.gmra.mrb[0].mxu0 %v46
    %v143 = vpop.f32.mrb[0].mxu0
    %v144 = vadd.f32 %v30, %v143
    %v145 = vpop.f32.mrb[0].mxu0
    %146 = vmatprep.mubr.f32.mxu0 0.0
    %147 = vmatmul.mubr.f32.gmra.mrb[0].mxu0 %v49
    %v148 = vpop.f32.mrb[0].mxu0
    %v149 = vadd.f32 %v30, %v148
    %v150 = vpop.f32.mrb[0].mxu0
    %151 = vmatprep.mubr.f32.mxu0 0.0
    %152 = vmatmul.mubr.f32.gmra.mrb[0].mxu0 %v52
    %v153 = vpop.f32.mrb[0].mxu0
    %v154 = vadd.f32 %v30, %v153
    %v155 = vpop.f32.mrb[0].mxu0
    %156 = vmatprep.mubr.f32.mxu0 0.0
    %157 = vmatmul.mubr.f32.gmra.mrb[0].mxu0 %v55
    %v158 = vpop.f32.mrb[0].mxu0
    %v159 = vadd.f32 %v30, %v158
    %v160 = vpop.f32.mrb[0].mxu0
    %161 = vdwg.mxu0
    %162 = vst [vmem:[#allocation2] sm:$0xff] %v124
    %163 = vst [vmem:[#allocation2 + $0x8] sm:$0xff] %v129
    %164 = vst [vmem:[#allocation2 + $0x10] sm:$0xff] %v134
    %165 = vst [vmem:[#allocation2 + $0x18] sm:$0xff] %v139
    %166 = vst [vmem:[#allocation2 + $0x20] sm:$0xff] %v144
    %167 = vst [vmem:[#allocation2 + $0x28] sm:$0xff] %v149
    %168 = vst [vmem:[#allocation2 + $0x30] sm:$0xff] %v154
    %169 = vst [vmem:[#allocation2 + $0x38] sm:$0xff] %v159
    // Predicated region
    $region14: #{tpu_custom_call.1} parent=1 // pred_check
      _
    $region15: #{tpu_custom_call.1} parent=1 // pred_check_branch
      %171 = sbr.rel (0) target = $region17
    $region16: #{tpu_custom_call.1} parent=1 // pred_region
      %s173 = ssub.s32 1024, 1024
      %174 = vsyncadd [#allocation3], %s173
      %s175 = sshll.u32 [#allocation2], 4
      %s176 = int_to_ptr.vmem [resolvable:$true] %s175
      %181 = dma.vmem_to_hbm [thread:$0]  %s176, 1024, %s3, [#allocation3], 128, 128, 8
    $region17: #{tpu_custom_call.1} parent=1 // pred_fallthru
      _
    // Predicated region
    $region18: #{tpu_custom_call.1} parent=1 // pred_check
      _
    $region19: #{tpu_custom_call.1} parent=1 // pred_check_branch
      %183 = sbr.rel (0) target = $region21
    $region20: #{tpu_custom_call.1} parent=1 // pred_region
      %184 = dma.done [#allocation3], 1024
    $region21: #{tpu_custom_call.1} parent=1 // pred_fallthru
      _
    %185 = vsyncpa [#allocation3], 1

</llo_original>
